<compile_context>
chip_gen: v7x
topology: tpu7x:2x2x1
jax: 0.10.0
libtpu: 0.0.40
codegen_flags: <defaults>
</compile_context>

<pallas_src>
import jax
import jax.numpy as jnp
from jax.experimental import pallas as pl
from jax.experimental.pallas import tpu as pltpu


# Split a single array across multiple DMA descriptors only above this size,
# so huge tensors get a handful of concurrent large transfers.
_DEFAULT_MAX_DMA_BYTES = 256 * 1024 * 1024


def _chunk_plan(n_elems: int, itemsize: int, max_dma_bytes: int):
    """Static (start, size) chunks covering a length-`n_elems` contiguous row."""
    max_elems = max(1, int(max_dma_bytes) // int(itemsize))
    plan = []
    start = 0
    while start < n_elems:
        size = min(max_elems, n_elems - start)
        plan.append((start, size))
        start += size
    return plan


def _make_dma_copy_kernel(chunk_plans):
    """Kernel copying each (1, n) HBM input to its HBM output via async DMAs."""
    n_args = len(chunk_plans)

    def kernel(*refs):
        in_refs = refs[:n_args]
        out_refs = refs[n_args:2 * n_args]
        sems = refs[2 * n_args]          # DMA semaphore array, one per DMA
        copies = []
        k = 0
        for a, plan in enumerate(chunk_plans):
            for start, size in plan:     # static Python slices -> zero-cost views
                copies.append(pltpu.make_async_copy(
                    in_refs[a].at[:, start:start + size],
                    out_refs[a].at[:, start:start + size],
                    sems.at[k]))
                k += 1
        for cp in copies:                # issue everything first ...
            cp.start()
        for cp in copies:                # ... then block on completion
            cp.wait()

    return kernel


def _identity_copy(arrays, max_dma_bytes: int = _DEFAULT_MAX_DMA_BYTES):
    """Materialize fresh copies of `arrays` with one fused pallas_call doing
    pure HBM->HBM DMAs (no VMEM bounce, no grid)."""
    # Flat (1, n) views: free for default row-major contiguous layouts.
    flats = [jnp.reshape(a, (1, a.size)) for a in arrays]
    plans = [
        _chunk_plan(f.shape[1], jnp.dtype(f.dtype).itemsize, max_dma_bytes)
        for f in flats
    ]
    n_dmas = sum(len(p) for p in plans)
    outs2d = pl.pallas_call(
        _make_dma_copy_kernel(plans),
        out_shape=tuple(jax.ShapeDtypeStruct(f.shape, f.dtype) for f in flats),
        in_specs=[pl.BlockSpec(memory_space=pl.ANY) for _ in flats],
        out_specs=tuple(pl.BlockSpec(memory_space=pl.ANY) for _ in flats),
        scratch_shapes=[pltpu.SemaphoreType.DMA((n_dmas,))],
    )(*flats)
    return [jnp.reshape(o, a.shape) for o, a in zip(outs2d, arrays)]


def identity(x: jax.Array, *, use_kernel: bool = True,
             max_dma_bytes: int = _DEFAULT_MAX_DMA_BYTES) -> jax.Array:
    """Identity of a single array.

    use_kernel=False returns `x` unchanged (the truly optimal identity: zero
    HBM traffic). use_kernel=True materializes a fresh buffer via the
    HBM->HBM DMA copy kernel.
    """
    if not use_kernel or x.ndim == 0 or x.size == 0:
        return x
    return _identity_copy([x], max_dma_bytes=max_dma_bytes)[0]


def identity_module_forward(*args, use_kernel: bool = True,
                            max_dma_bytes: int = _DEFAULT_MAX_DMA_BYTES):
    """Mirror of `_IdentityModule.forward`: returns the tuple of args if more
    than one arg is given, else the single arg."""
    if not args:
        raise TypeError("identity_module_forward expects at least one argument")
    outs = list(args)
    if use_kernel:
        # Fuse every copy-eligible arg into ONE pallas_call (single launch,
        # all DMAs in flight together). 0-d / empty args pass through.
        idx = [i for i, a in enumerate(args) if a.ndim >= 1 and a.size > 0]
        if idx:
            copies = _identity_copy([args[i] for i in idx],
                                    max_dma_bytes=max_dma_bytes)
            for j, i in enumerate(idx):
                outs[i] = copies[j]
    return tuple(outs) if len(outs) > 1 else outs[0]


if __name__ == "__main__":
    key = jax.random.PRNGKey(0)
    k1, k2 = jax.random.split(key)

    # Single-arg case (NCHW-like tensor): one HBM->HBM DMA, no VMEM staging.
    x = jax.random.normal(k1, (2, 4, 16, 16), dtype=jnp.float32)
    y = identity_module_forward(x)
    y = jax.block_until_ready(y)
    assert y.shape == x.shape and y.dtype == x.dtype
    assert jnp.array_equal(y, x)

    # Multi-arg case: forward returns the tuple of args; both copies happen
    # inside one fused pallas_call.
    a = jax.random.normal(k2, (8, 32), dtype=jnp.float32)
    outs = identity_module_forward(x, a)
    outs = jax.block_until_ready(outs)
    assert isinstance(outs, tuple) and len(outs) == 2
    assert jnp.array_equal(outs[0], x)
    assert jnp.array_equal(outs[1], a)

    # Exercise the multi-DMA chunking path (several contiguous descriptors
    # per array) by lowering the per-DMA byte cap.
    y_chunked = identity_module_forward(x, max_dma_bytes=1024)
    y_chunked = jax.block_until_ready(y_chunked)
    assert jnp.array_equal(y_chunked, x)

    # Zero-cost fast path (true identity: no kernel, no HBM traffic).
    z = identity_module_forward(x, use_kernel=False)
    assert z is x

    print("KERNEL_OK")
</pallas_src>

<mosaic_0001>
module attributes {stable_mosaic.version = 11 : i64} {
  func.func @kernel(%arg0: memref<1x2048xf32, #tpu.memory_space<any>>, %arg1: memref<1x2048xf32, #tpu.memory_space<any>>, %arg2: memref<1x!tpu.dma_semaphore, #tpu.memory_space<semaphore_mem>>) attributes {dimension_semantics = [], scalar_prefetch = 0 : i64, scratch_operands = 1 : i64, tpu.core_type = #tpu.core_type<tc>} {
    %c0_i32 = arith.constant 0 : i32
    %c0_i32_0 = arith.constant 0 : i32
    %c0_i32_1 = arith.constant 0 : i32
    %0 = tpu.memref_slice %arg0[%c0_i32_0, %c0_i32_1] : memref<1x2048xf32, #tpu.memory_space<any>> -> memref<1x2048xf32, #tpu.memory_space<any>>
    %c0_i32_2 = arith.constant 0 : i32
    %c0_i32_3 = arith.constant 0 : i32
    %1 = tpu.memref_slice %arg1[%c0_i32_2, %c0_i32_3] : memref<1x2048xf32, #tpu.memory_space<any>> -> memref<1x2048xf32, #tpu.memory_space<any>>
    %2 = tpu.memref_slice %arg2[%c0_i32] : memref<1x!tpu.dma_semaphore, #tpu.memory_space<semaphore_mem>> -> memref<1x!tpu.dma_semaphore, #tpu.memory_space<semaphore_mem>>
    %3 = tpu.memref_squeeze %2 : memref<1x!tpu.dma_semaphore, #tpu.memory_space<semaphore_mem>> -> memref<!tpu.dma_semaphore, #tpu.memory_space<semaphore_mem>>
    tpu.enqueue_dma source(%0 : memref<1x2048xf32, #tpu.memory_space<any>>) target(%1 : memref<1x2048xf32, #tpu.memory_space<any>>) target_semaphore(%3 : memref<!tpu.dma_semaphore, #tpu.memory_space<semaphore_mem>>)
    %c0_i32_4 = arith.constant 0 : i32
    %c0_i32_5 = arith.constant 0 : i32
    %c0_i32_6 = arith.constant 0 : i32
    %4 = tpu.memref_slice %arg0[%c0_i32_5, %c0_i32_6] : memref<1x2048xf32, #tpu.memory_space<any>> -> memref<1x2048xf32, #tpu.memory_space<any>>
    %c0_i32_7 = arith.constant 0 : i32
    %c0_i32_8 = arith.constant 0 : i32
    %5 = tpu.memref_slice %arg1[%c0_i32_7, %c0_i32_8] : memref<1x2048xf32, #tpu.memory_space<any>> -> memref<1x2048xf32, #tpu.memory_space<any>>
    %6 = tpu.memref_slice %arg2[%c0_i32_4] : memref<1x!tpu.dma_semaphore, #tpu.memory_space<semaphore_mem>> -> memref<1x!tpu.dma_semaphore, #tpu.memory_space<semaphore_mem>>
    %7 = tpu.memref_squeeze %6 : memref<1x!tpu.dma_semaphore, #tpu.memory_space<semaphore_mem>> -> memref<!tpu.dma_semaphore, #tpu.memory_space<semaphore_mem>>
    tpu.wait_dma2 semaphore(%7 : memref<!tpu.dma_semaphore, #tpu.memory_space<semaphore_mem>>) src(%4 : memref<1x2048xf32, #tpu.memory_space<any>>) dst(%5 : memref<1x2048xf32, #tpu.memory_space<any>>)
    return
  }
}

</mosaic_0001>

<llo_original>
// kernel: tpu_custom_call.1
$region0: #{tpu_custom_call.1}
  #allocation0 [shape = 'u32[]', space=smem, size = 0x4, offset = 0x4, fixed_abs, tag = 'smem constant byte address 0x4 - core index']
  #allocation1 [shape = 'u32[144,128]{1,0:T(1,128)}', space=vmem, size = 0x12000, scoped, tag = 'internal scratch']
  #allocation2 [shape = 's32[1]{0}', space=sflag, size = 0x4, scoped, tag = 'scratch operand']
  #allocation3 [shape = 's32[]', space=sflag, size = 0x4, offset = 0, fixed_abs, tag = 'sflag constant byte address 0x0 - dummy sync flag']
  #allocation4 [shape = 'u32[0]{0}', space=smem, size = 0, offset = 0, fixed_abs, tag = 'smem constant byte address 0x0 - null']
  %s0 = inlined_call_operand.hbm [shape: f32[1,2048], index: 0, kind: input, shape index: {}]
  %s1 = inlined_call_operand.hbm [shape: f32[1,2048], index: 1, kind: output, shape index: {}]
  %s2 = sld [smem:[#allocation0]]
  $region2: #{tpu_custom_call.1} parent=0
    _
  %s4 = ssub.s32 1, %s2
  %s5 = scalar_select 0, %s4, %s2
  %s7 = sshll.u32 1, 14
  %s8 = sxor.u32 4294967295, %s7
  %s11 = sshll.u32 3, 24
  %s12 = sxor.u32 4294967295, %s11
  %s13 = sand.u32 0, %s12
  %s15 = sor.u32 %s13, 0
  %18 = dma.general %s0, 256, %s1, [#allocation2], [#allocation3], [#allocation4], %s15, 0
  %s19 = smul.u32 1, 16
  %s20 = sshll.u32 %s19, 4
  %21 = dma.done [#allocation2], %s20
  %22 = vsyncmov [#allocation2]
  %s23 = vpop.sfrf %22
  %p24 = scmp.eq.s32.totalorder %s23, 0
  %p25 = pneg %p24
  %27 = shalt.err (%p25)

</llo_original>
